<compile_context>
chip_gen: v6e
topology: v6e:2x2x1
jax: 0.10.0
libtpu: 0.0.40
codegen_flags: <defaults>
</compile_context>

<pallas_src>
import math
from functools import partial

import numpy as np
import jax
import jax.numpy as jnp
from jax.experimental import pallas as pl
from jax.experimental.pallas import tpu as pltpu

# ----------------------------------------------------------------------------
# Configuration (small shapes consistent with the module; constructor args only)
# ----------------------------------------------------------------------------
EMBED_DIM = 128          # module default (lane-aligned)
NUM_EMBEDDINGS = 256     # Embedder default
NUM_D_FEATURE = 32       # default
NUM_T_FEATURE = 64       # small instead of 512 (constructor arg)
MAX_LEN = 64             # positional-encoding table length (>= max seq used)
EPS_BN = 1e-5
KS = (2, 3, 4, 5)        # conv kernel heights of CNNEncoder
T_TAPS = max(KS)         # 5 tap groups in the packed conv weight


# ----------------------------------------------------------------------------
# The single fused Pallas kernel: drug CNN + target CNN + (pre-folded) predict MLP
# ----------------------------------------------------------------------------
def _dti_fused_kernel(xd_ref, xt_ref, wd_ref, wt_ref, pp_ref, o_ref, *,
                      B, S_d, S_t, oc_d, oc_t):
    """One grid step computes the whole forward for all batch rows.

    xd_ref / xt_ref hold the embedded sequences flattened to (B*S + 4, D) bf16 rows in
    exactly the raw-reshape order PyTorch's `emb.reshape(batch, 1, seq_len, D)` produces
    (row of batch b, position s == b*S + s), plus 4 zero rows of padding so the tap
    shift-adds never read out of bounds.
    """
    nd, nt = 4 * oc_d, 4 * oc_t
    pp = pp_ref[...]                       # (5, 128) f32: all small params, one DMA
    shift_d = pp[0:1, 0:nd]                # BN shift (conv bias folded), drug
    weff_d = pp[1:2, 0:nd]                 # collapsed predict-MLP weights, drug-CNN rows
    shift_t = pp[2:3, 0:nt]
    weff_t = pp[3:4, 0:nt]
    b_eff = pp[4:5, 0:1]                   # (1,1) collapsed bias (incl. transformer fold)

    def encoder_act(x_ref, w_ref, shift, S, oc):
        """CNN encoder up to ReLU: one lane-dense matmul + shift-add tap reduction.

        Returns the post-BN/ReLU map of shape (B*S, 4*oc); only rows [b*S, b*S+S-k+1)
        are valid for the k-branch and are the only ones pooled below.  Taps j >= k of a
        branch have zero weight columns, so cross-batch rows contribute exactly 0.
        """
        nf = 4 * oc
        x = x_ref[...]                                                    # bf16, cast hoisted to wrapper
        y = jnp.dot(x, w_ref[...], preferred_element_type=jnp.float32)   # (B*S+4, 5*nf) f32
        R = B * S
        z = y[0:R, 0:nf]                                                  # tap 0
        for j in range(1, T_TAPS):                                        # 4 shift-adds
            z = z + y[j:j + R, j * nf:(j + 1) * nf]
        return jnp.maximum(z + shift, 0.0)                                # BN shift + ReLU (scale in W)

    a_d = encoder_act(xd_ref, wd_ref, shift_d, S_d, oc_d)                 # (B*S_d, nd)
    a_t = encoder_act(xt_ref, wt_ref, shift_t, S_t, oc_t)                 # (B*S_t, nt)

    def pooled_dot(a, weff, S, oc, b):
        """Full-height MaxPool over the valid positions of each branch, then the
        collapsed predict-MLP contribution as a VPU multiply + lane reduction."""
        acc = jnp.zeros((1, 1), jnp.float32)
        for bi, k in enumerate(KS):
            P = S - k + 1
            blk = a[b * S:b * S + P, bi * oc:(bi + 1) * oc]               # (P, oc)
            f = jnp.max(blk, axis=0, keepdims=True)                       # MaxPool -> (1, oc)
            acc = acc + jnp.sum(f * weff[:, bi * oc:(bi + 1) * oc],
                                axis=-1, keepdims=True)
        return acc

    # B is tiny and static; only the cheap VPU/XLU pooling+reduction is unrolled.
    outs = []
    for b in range(B):
        ob = b_eff + pooled_dot(a_d, weff_d, S_d, oc_d, b) \
                   + pooled_dot(a_t, weff_t, S_t, oc_t, b)
        outs.append(ob)                                                   # (1, 1)
    o_ref[...] = jnp.concatenate(outs, axis=1)                            # single (1, B) store


def pallas_dti_forward(ip, xd_flat, xt_flat, B, S_d, S_t):
    args = (xd_flat, xt_flat, ip["wd"], ip["wt"], ip["pp"])
    kern = partial(_dti_fused_kernel, B=B, S_d=S_d, S_t=S_t,
                   oc_d=NUM_D_FEATURE // 4, oc_t=NUM_T_FEATURE // 4)
    full = lambda a: pl.BlockSpec(a.shape, lambda i: (0,) * a.ndim)  # whole array in VMEM
    return pl.pallas_call(
        kern,
        out_shape=jax.ShapeDtypeStruct((1, B), jnp.float32),
        grid=(1,),
        in_specs=[full(a) for a in args],
        out_specs=pl.BlockSpec((1, B), lambda i: (0, 0)),
        # Single step: nothing to shard/pipeline.  For large B one would grid over the
        # batch and mark it "parallel" (v7x 2 TCs); at B=2 that is pure overhead.
        compiler_params=pltpu.CompilerParams(dimension_semantics=("arbitrary",)),
    )(*args)


# ----------------------------------------------------------------------------
# JAX glue: shared Embedder (gather + scale + positional encoding), param prep
# ----------------------------------------------------------------------------
def embed_tokens(ip, tokens):
    """Embedder: tokens.view(S, B) raw reshape, embedding lookup, * sqrt(D), + PE.
    (PositionalEncoding dropout is identity in eval.)  Returns the buffer flattened
    row-major to (S*B + 4, D) bf16: this matches torch's later raw reshape
    emb.reshape(batch, 1, seq_len, D) -> CNN row (b, s) == flat row b*S + s, plus
    T_TAPS-1 zero rows so the in-kernel tap shift-adds never read out of bounds."""
    B, S = tokens.shape
    tok = tokens.reshape(S, B)                                    # torch .view(seq_len, batch)
    # TODO(synk): embedding row-gather stays in plain JAX (jnp.take); a Pallas
    # scalar-prefetch gather kernel is possible but pointless at these sizes.
    emb = jnp.take(ip["embedding"], tok, axis=0)                  # (S, B, D)
    emb = emb * math.sqrt(EMBED_DIM) + ip["pe"][:S][:, None, :]   # scale + PE (XLA-fused)
    x = emb.reshape(S * B, EMBED_DIM)
    pad = jnp.zeros((T_TAPS - 1, EMBED_DIM), x.dtype)
    return jnp.concatenate([x, pad], axis=0).astype(jnp.bfloat16)  # bf16 cast hoisted here


def prepare_inference_params(params):
    """Fold BN-eval stats into the packed conv weights, repack conv weights to a
    (128, 5*nf) lane-dense bf16 layout, collapse the predict MLP to a single affine
    (folding the constant transformer branches into the bias), and pack all small
    per-lane parameters into one (5,128) f32 array."""
    D = EMBED_DIM

    def prep_cnn(p, nf):
        oc = nf // 4
        scale = p["bn_gamma"] / jnp.sqrt(p["bn_var"] + EPS_BN)    # BN(eval) scale, per channel
        shift_bn = p["bn_beta"] - p["bn_mean"] * scale
        # per (branch, channel) shift: conv bias folded through BN; branch-major layout
        shift = jnp.concatenate([p[f"conv{k}_b"] * scale + shift_bn for k in KS])   # (nf,)
        # packed weight (D, 5*nf): tap-major lane groups, branch-major inside a group,
        # BN scale folded into the columns; taps j >= k of a branch stay zero.
        w = jnp.zeros((D, T_TAPS * nf), jnp.float32)
        for bi, k in enumerate(KS):
            wk = p[f"conv{k}_w"]                                  # (k*D, oc), rows tap-major
            for j in range(k):
                col0 = j * nf + bi * oc
                w = w.at[:, col0:col0 + oc].set(wk[j * D:(j + 1) * D, :] * scale[None, :])
        return w.astype(jnp.bfloat16), shift

    wd, shift_d = prep_cnn(params["drug_cnn"], NUM_D_FEATURE)
    wt, shift_t = prep_cnn(params["target_cnn"], NUM_T_FEATURE)

    pr = params["predict"]
    nd, nt = NUM_D_FEATURE, NUM_T_FEATURE
    # No nonlinearity between the three Linears (Dropout = identity) -> collapse to one
    # affine 192 -> 1.  TransEncoder outputs are identically 1.0 (F.softmax over a
    # size-1 implicit dim), so their 96 weight rows reduce to a constant in the bias.
    w_eff = (pr["w1"] @ pr["w2"] @ pr["w3"]).reshape(-1)                 # (192,)
    b_eff = ((pr["b1"] @ pr["w2"] + pr["b2"]) @ pr["w3"] + pr["b3"]).reshape(())
    b_eff = b_eff + jnp.sum(w_eff[nd + nt:])                             # transformer-ones fold

    pp = jnp.zeros((5, 128), jnp.float32)                                # one DMA for all of these
    pp = pp.at[0, :nd].set(shift_d)
    pp = pp.at[1, :nd].set(w_eff[:nd])
    pp = pp.at[2, :nt].set(shift_t)
    pp = pp.at[3, :nt].set(w_eff[nd:nd + nt])
    pp = pp.at[4, 0].set(b_eff)

    return {"embedding": params["embedding"], "pe": params["pe"],
            "wd": wd, "wt": wt, "pp": pp}


def dti_forward(ip, drugs, targets):
    B, S_d = drugs.shape
    _, S_t = targets.shape
    # guard: every conv branch needs P = S - k + 1 > 0
    assert S_d >= max(KS) and S_t >= max(KS), "sequence shorter than largest conv kernel"
    assert S_d <= MAX_LEN and S_t <= MAX_LEN
    xd = embed_tokens(ip, drugs)                 # shared Embedder (bf16, padded)
    xt = embed_tokens(ip, targets)
    out = pallas_dti_forward(ip, xd, xt, B, S_d, S_t)     # (1, B)
    # NOTE: self.sigmoid is defined but never applied in the reference forward().
    return out.reshape(B)


# ----------------------------------------------------------------------------
# Pure-JAX reference (same eval-mode semantics) for a correctness check
# ----------------------------------------------------------------------------
def reference_forward(params, drugs, targets):
    D = EMBED_DIM

    def embed(tokens):
        B, S = tokens.shape
        tok = tokens.reshape(S, B)
        emb = (jnp.take(params["embedding"], tok, axis=0) * math.sqrt(D)
               + params["pe"][:S][:, None, :])
        return emb.reshape(B, S, D)              # torch's raw reshape into CNN layout

    def cnn(p, x):
        B, S, _ = x.shape
        scale = p["bn_gamma"] / jnp.sqrt(p["bn_var"] + EPS_BN)
        shift = p["bn_beta"] - p["bn_mean"] * scale
        outs = []
        for k in KS:
            P = S - k + 1
            w = p[f"conv{k}_w"]
            conv = sum(jnp.einsum("bpd,do->bpo", x[:, j:j + P, :], w[j * D:(j + 1) * D, :])
                       for j in range(k))
            y = jnp.maximum((conv + p[f"conv{k}_b"]) * scale + shift, 0.0)
            outs.append(jnp.max(y, axis=1))
        return jnp.concatenate(outs, axis=1)

    B = drugs.shape[0]
    df = cnn(params["drug_cnn"], embed(drugs))
    tf = cnn(params["target_cnn"], embed(targets))
    # transformer branches: softmax over size-1 dim -> constant ones
    comb = jnp.concatenate(
        [df, tf, jnp.ones((B, NUM_D_FEATURE)), jnp.ones((B, NUM_T_FEATURE))], axis=1)
    pr = params["predict"]
    h = comb @ pr["w1"] + pr["b1"]
    h = h @ pr["w2"] + pr["b2"]
    out = h @ pr["w3"] + pr["b3"]
    return out.reshape(B)


# ----------------------------------------------------------------------------
# Deterministic parameter initialization (shapes from the module's __init__)
# ----------------------------------------------------------------------------
def positional_encoding_table(max_len, d):
    position = np.arange(max_len, dtype=np.float32)[:, None]
    div_term = np.exp(np.arange(0, d, 2, dtype=np.float32) * (-math.log(10000.0) / d))
    pe = np.zeros((max_len, d), dtype=np.float32)
    pe[:, 0::2] = np.sin(position * div_term)
    pe[:, 1::2] = np.cos(position * div_term)
    return jnp.asarray(pe)


def init_params(key):
    d, nd, nt = EMBED_DIM, NUM_D_FEATURE, NUM_T_FEATURE
    keys = iter(jax.random.split(key, 64))
    nk = lambda: next(keys)

    def linear(fan_in, fan_out):
        bound = 1.0 / math.sqrt(fan_in)
        w = jax.random.uniform(nk(), (fan_in, fan_out), jnp.float32, -bound, bound)
        b = jax.random.uniform(nk(), (fan_out,), jnp.float32, -bound, bound)
        return w, b

    def cnn_encoder(nf):
        oc = nf // 4
        enc = {
            "bn_gamma": 1.0 + 0.1 * jax.random.normal(nk(), (oc,), jnp.float32),
            "bn_beta": 0.1 * jax.random.normal(nk(), (oc,), jnp.float32),
            "bn_mean": 0.1 * jax.random.normal(nk(), (oc,), jnp.float32),
            "bn_var": 1.0 + 0.1 * jax.random.uniform(nk(), (oc,), jnp.float32),
        }
        for k in KS:
            # Conv2d(1, oc, (k, d)) weight (oc,1,k,d) stored flattened/transposed: (k*d, oc)
            w, b = linear(k * d, oc)
            enc[f"conv{k}_w"], enc[f"conv{k}_b"] = w, b
        return enc

    pre_in = 2 * (nd + nt)
    w1, b1 = linear(pre_in, nd + nt)
    w2, b2 = linear(nd + nt, 64)
    w3, b3 = linear(64, 1)
    return {
        "embedding": 0.1 * jax.random.normal(nk(), (NUM_EMBEDDINGS, d), jnp.float32),
        "pe": positional_encoding_table(MAX_LEN, d),
        "drug_cnn": cnn_encoder(nd),
        "target_cnn": cnn_encoder(nt),
        # NOTE: TransEncoder weights are intentionally not materialized — its forward
        # output is identically 1.0 (implicit-dim softmax over a size-1 axis) and is
        # independent of weights/inputs; the constant is folded into the predict bias.
        "predict": {"w1": w1, "b1": b1, "w2": w2, "b2": b2, "w3": w3, "b3": b3},
    }


# ----------------------------------------------------------------------------
if __name__ == "__main__":
    key = jax.random.PRNGKey(0)
    k_par, k_drug, k_tgt = jax.random.split(key, 3)

    B, S_DRUG, S_TARGET = 2, 8, 10
    params = init_params(k_par)
    infer_params = prepare_inference_params(params)
    drugs = jax.random.randint(k_drug, (B, S_DRUG), 0, NUM_EMBEDDINGS, dtype=jnp.int32)
    targets = jax.random.randint(k_tgt, (B, S_TARGET), 0, NUM_EMBEDDINGS, dtype=jnp.int32)

    fwd = jax.jit(dti_forward)
    out = jax.block_until_ready(fwd(infer_params, drugs, targets))

    assert out.shape == (B,), out.shape
    assert bool(jnp.all(jnp.isfinite(out)))
    ref = reference_forward(params, drugs, targets)
    assert bool(jnp.allclose(out, ref, rtol=5e-2, atol=5e-2)), (out, ref)
    print("KERNEL_OK")
</pallas_src>

<mosaic_0001>
module attributes {stable_mosaic.version = 11 : i64} {
  func.func @_dti_fused_kernel(%arg0: i32, %arg1: memref<20x128xbf16, #tpu.memory_space<vmem>>, %arg2: memref<24x128xbf16, #tpu.memory_space<vmem>>, %arg3: memref<128x160xbf16, #tpu.memory_space<vmem>>, %arg4: memref<128x320xbf16, #tpu.memory_space<vmem>>, %arg5: memref<5x128xf32, #tpu.memory_space<vmem>>, %arg6: memref<1x2xf32, #tpu.memory_space<vmem>>) attributes {dimension_semantics = [#tpu.dimension_semantics<arbitrary>], iteration_bounds = array<i64: 1>, scalar_prefetch = 0 : i64, scratch_operands = 0 : i64, tpu.core_type = #tpu.core_type<tc>, window_params = [{pipeline_mode = #tpu.pipeline_mode<synchronous>, transform_indices = @transform_0, window_bounds = array<i64: 20, 128>}, {pipeline_mode = #tpu.pipeline_mode<synchronous>, transform_indices = @transform_1, window_bounds = array<i64: 24, 128>}, {pipeline_mode = #tpu.pipeline_mode<synchronous>, transform_indices = @transform_2, window_bounds = array<i64: 128, 160>}, {pipeline_mode = #tpu.pipeline_mode<synchronous>, transform_indices = @transform_3, window_bounds = array<i64: 128, 320>}, {pipeline_mode = #tpu.pipeline_mode<synchronous>, transform_indices = @transform_4, window_bounds = array<i64: 5, 128>}, {pipeline_mode = #tpu.pipeline_mode<synchronous>, transform_indices = @transform_5, window_bounds = array<i64: 1, 2>}]} {
    %c0 = arith.constant 0 : index
    %c0_0 = arith.constant 0 : index
    %0 = vector.load %arg5[%c0, %c0_0] : memref<5x128xf32, #tpu.memory_space<vmem>>, vector<5x128xf32>
    %1 = vector.extract_strided_slice %0 {offsets = [0, 0], sizes = [1, 32], strides = [1, 1]} : vector<5x128xf32> to vector<1x32xf32>
    %2 = vector.extract_strided_slice %0 {offsets = [1, 0], sizes = [1, 32], strides = [1, 1]} : vector<5x128xf32> to vector<1x32xf32>
    %3 = vector.extract_strided_slice %0 {offsets = [2, 0], sizes = [1, 64], strides = [1, 1]} : vector<5x128xf32> to vector<1x64xf32>
    %4 = vector.extract_strided_slice %0 {offsets = [3, 0], sizes = [1, 64], strides = [1, 1]} : vector<5x128xf32> to vector<1x64xf32>
    %5 = vector.extract_strided_slice %0 {offsets = [4, 0], sizes = [1, 1], strides = [1, 1]} : vector<5x128xf32> to vector<1x1xf32>
    %c0_1 = arith.constant 0 : index
    %c0_2 = arith.constant 0 : index
    %6 = vector.load %arg1[%c0_1, %c0_2] : memref<20x128xbf16, #tpu.memory_space<vmem>>, vector<20x128xbf16>
    %c0_3 = arith.constant 0 : index
    %c0_4 = arith.constant 0 : index
    %7 = vector.load %arg3[%c0_3, %c0_4] : memref<128x160xbf16, #tpu.memory_space<vmem>>, vector<128x160xbf16>
    %cst = arith.constant dense<0.000000e+00> : vector<20x160xf32>
    %8 = tpu.matmul %6, %7, %cst {dimension_numbers = #tpu.dot_dimension_numbers<[1], [0], [0], [1], [0, 0, 1, 1], [], []>} : vector<20x128xbf16>, vector<128x160xbf16>, vector<20x160xf32> -> vector<20x160xf32>
    %9 = vector.extract_strided_slice %8 {offsets = [0, 0], sizes = [16, 32], strides = [1, 1]} : vector<20x160xf32> to vector<16x32xf32>
    %10 = vector.extract_strided_slice %8 {offsets = [1, 32], sizes = [16, 32], strides = [1, 1]} : vector<20x160xf32> to vector<16x32xf32>
    %11 = arith.addf %9, %10 : vector<16x32xf32>
    %12 = vector.extract_strided_slice %8 {offsets = [2, 64], sizes = [16, 32], strides = [1, 1]} : vector<20x160xf32> to vector<16x32xf32>
    %13 = arith.addf %11, %12 : vector<16x32xf32>
    %14 = vector.extract_strided_slice %8 {offsets = [3, 96], sizes = [16, 32], strides = [1, 1]} : vector<20x160xf32> to vector<16x32xf32>
    %15 = arith.addf %13, %14 : vector<16x32xf32>
    %16 = vector.extract_strided_slice %8 {offsets = [4, 128], sizes = [16, 32], strides = [1, 1]} : vector<20x160xf32> to vector<16x32xf32>
    %17 = arith.addf %15, %16 : vector<16x32xf32>
    %18 = vector.broadcast %1 : vector<1x32xf32> to vector<16x32xf32>
    %19 = arith.addf %17, %18 : vector<16x32xf32>
    %cst_5 = arith.constant 0.000000e+00 : f32
    %20 = vector.broadcast %cst_5 : f32 to vector<16x32xf32>
    %21 = arith.maximumf %19, %20 : vector<16x32xf32>
    %c0_6 = arith.constant 0 : index
    %c0_7 = arith.constant 0 : index
    %22 = vector.load %arg2[%c0_6, %c0_7] : memref<24x128xbf16, #tpu.memory_space<vmem>>, vector<24x128xbf16>
    %c0_8 = arith.constant 0 : index
    %c0_9 = arith.constant 0 : index
    %23 = vector.load %arg4[%c0_8, %c0_9] : memref<128x320xbf16, #tpu.memory_space<vmem>>, vector<128x320xbf16>
    %cst_10 = arith.constant dense<0.000000e+00> : vector<24x320xf32>
    %24 = tpu.matmul %22, %23, %cst_10 {dimension_numbers = #tpu.dot_dimension_numbers<[1], [0], [0], [1], [0, 0, 1, 1], [], []>} : vector<24x128xbf16>, vector<128x320xbf16>, vector<24x320xf32> -> vector<24x320xf32>
    %25 = vector.extract_strided_slice %24 {offsets = [0, 0], sizes = [20, 64], strides = [1, 1]} : vector<24x320xf32> to vector<20x64xf32>
    %26 = vector.extract_strided_slice %24 {offsets = [1, 64], sizes = [20, 64], strides = [1, 1]} : vector<24x320xf32> to vector<20x64xf32>
    %27 = arith.addf %25, %26 : vector<20x64xf32>
    %28 = vector.extract_strided_slice %24 {offsets = [2, 128], sizes = [20, 64], strides = [1, 1]} : vector<24x320xf32> to vector<20x64xf32>
    %29 = arith.addf %27, %28 : vector<20x64xf32>
    %30 = vector.extract_strided_slice %24 {offsets = [3, 192], sizes = [20, 64], strides = [1, 1]} : vector<24x320xf32> to vector<20x64xf32>
    %31 = arith.addf %29, %30 : vector<20x64xf32>
    %32 = vector.extract_strided_slice %24 {offsets = [4, 256], sizes = [20, 64], strides = [1, 1]} : vector<24x320xf32> to vector<20x64xf32>
    %33 = arith.addf %31, %32 : vector<20x64xf32>
    %34 = vector.broadcast %3 : vector<1x64xf32> to vector<20x64xf32>
    %35 = arith.addf %33, %34 : vector<20x64xf32>
    %cst_11 = arith.constant 0.000000e+00 : f32
    %36 = vector.broadcast %cst_11 : f32 to vector<20x64xf32>
    %37 = arith.maximumf %35, %36 : vector<20x64xf32>
    %cst_12 = arith.constant 0.000000e+00 : f32
    %38 = vector.broadcast %cst_12 : f32 to vector<1x1xf32>
    %39 = vector.extract_strided_slice %21 {offsets = [0, 0], sizes = [7, 8], strides = [1, 1]} : vector<16x32xf32> to vector<7x8xf32>
    %cst_13 = arith.constant dense<0xFF800000> : vector<8xf32>
    %40 = vector.multi_reduction <maximumf>, %39, %cst_13 [0] : vector<7x8xf32> to vector<8xf32>
    %41 = vector.shape_cast %40 : vector<8xf32> to vector<1x8xf32>
    %42 = vector.extract_strided_slice %2 {offsets = [0, 0], sizes = [1, 8], strides = [1, 1]} : vector<1x32xf32> to vector<1x8xf32>
    %43 = arith.mulf %41, %42 : vector<1x8xf32>
    %cst_14 = arith.constant dense<0.000000e+00> : vector<1xf32>
    %44 = vector.multi_reduction <add>, %43, %cst_14 [1] : vector<1x8xf32> to vector<1xf32>
    %45 = vector.shape_cast %44 : vector<1xf32> to vector<1x1xf32>
    %46 = arith.addf %38, %45 : vector<1x1xf32>
    %47 = vector.extract_strided_slice %21 {offsets = [0, 8], sizes = [6, 8], strides = [1, 1]} : vector<16x32xf32> to vector<6x8xf32>
    %cst_15 = arith.constant dense<0xFF800000> : vector<8xf32>
    %48 = vector.multi_reduction <maximumf>, %47, %cst_15 [0] : vector<6x8xf32> to vector<8xf32>
    %49 = vector.shape_cast %48 : vector<8xf32> to vector<1x8xf32>
    %50 = vector.extract_strided_slice %2 {offsets = [0, 8], sizes = [1, 8], strides = [1, 1]} : vector<1x32xf32> to vector<1x8xf32>
    %51 = arith.mulf %49, %50 : vector<1x8xf32>
    %cst_16 = arith.constant dense<0.000000e+00> : vector<1xf32>
    %52 = vector.multi_reduction <add>, %51, %cst_16 [1] : vector<1x8xf32> to vector<1xf32>
    %53 = vector.shape_cast %52 : vector<1xf32> to vector<1x1xf32>
    %54 = arith.addf %46, %53 : vector<1x1xf32>
    %55 = vector.extract_strided_slice %21 {offsets = [0, 16], sizes = [5, 8], strides = [1, 1]} : vector<16x32xf32> to vector<5x8xf32>
    %cst_17 = arith.constant dense<0xFF800000> : vector<8xf32>
    %56 = vector.multi_reduction <maximumf>, %55, %cst_17 [0] : vector<5x8xf32> to vector<8xf32>
    %57 = vector.shape_cast %56 : vector<8xf32> to vector<1x8xf32>
    %58 = vector.extract_strided_slice %2 {offsets = [0, 16], sizes = [1, 8], strides = [1, 1]} : vector<1x32xf32> to vector<1x8xf32>
    %59 = arith.mulf %57, %58 : vector<1x8xf32>
    %cst_18 = arith.constant dense<0.000000e+00> : vector<1xf32>
    %60 = vector.multi_reduction <add>, %59, %cst_18 [1] : vector<1x8xf32> to vector<1xf32>
    %61 = vector.shape_cast %60 : vector<1xf32> to vector<1x1xf32>
    %62 = arith.addf %54, %61 : vector<1x1xf32>
    %63 = vector.extract_strided_slice %21 {offsets = [0, 24], sizes = [4, 8], strides = [1, 1]} : vector<16x32xf32> to vector<4x8xf32>
    %cst_19 = arith.constant dense<0xFF800000> : vector<8xf32>
    %64 = vector.multi_reduction <maximumf>, %63, %cst_19 [0] : vector<4x8xf32> to vector<8xf32>
    %65 = vector.shape_cast %64 : vector<8xf32> to vector<1x8xf32>
    %66 = vector.extract_strided_slice %2 {offsets = [0, 24], sizes = [1, 8], strides = [1, 1]} : vector<1x32xf32> to vector<1x8xf32>
    %67 = arith.mulf %65, %66 : vector<1x8xf32>
    %cst_20 = arith.constant dense<0.000000e+00> : vector<1xf32>
    %68 = vector.multi_reduction <add>, %67, %cst_20 [1] : vector<1x8xf32> to vector<1xf32>
    %69 = vector.shape_cast %68 : vector<1xf32> to vector<1x1xf32>
    %70 = arith.addf %62, %69 : vector<1x1xf32>
    %71 = arith.addf %5, %70 : vector<1x1xf32>
    %cst_21 = arith.constant 0.000000e+00 : f32
    %72 = vector.broadcast %cst_21 : f32 to vector<1x1xf32>
    %73 = vector.extract_strided_slice %37 {offsets = [0, 0], sizes = [9, 16], strides = [1, 1]} : vector<20x64xf32> to vector<9x16xf32>
    %cst_22 = arith.constant dense<0xFF800000> : vector<16xf32>
    %74 = vector.multi_reduction <maximumf>, %73, %cst_22 [0] : vector<9x16xf32> to vector<16xf32>
    %75 = vector.shape_cast %74 : vector<16xf32> to vector<1x16xf32>
    %76 = vector.extract_strided_slice %4 {offsets = [0, 0], sizes = [1, 16], strides = [1, 1]} : vector<1x64xf32> to vector<1x16xf32>
    %77 = arith.mulf %75, %76 : vector<1x16xf32>
    %cst_23 = arith.constant dense<0.000000e+00> : vector<1xf32>
    %78 = vector.multi_reduction <add>, %77, %cst_23 [1] : vector<1x16xf32> to vector<1xf32>
    %79 = vector.shape_cast %78 : vector<1xf32> to vector<1x1xf32>
    %80 = arith.addf %72, %79 : vector<1x1xf32>
    %81 = vector.extract_strided_slice %37 {offsets = [0, 16], sizes = [8, 16], strides = [1, 1]} : vector<20x64xf32> to vector<8x16xf32>
    %cst_24 = arith.constant dense<0xFF800000> : vector<16xf32>
    %82 = vector.multi_reduction <maximumf>, %81, %cst_24 [0] : vector<8x16xf32> to vector<16xf32>
    %83 = vector.shape_cast %82 : vector<16xf32> to vector<1x16xf32>
    %84 = vector.extract_strided_slice %4 {offsets = [0, 16], sizes = [1, 16], strides = [1, 1]} : vector<1x64xf32> to vector<1x16xf32>
    %85 = arith.mulf %83, %84 : vector<1x16xf32>
    %cst_25 = arith.constant dense<0.000000e+00> : vector<1xf32>
    %86 = vector.multi_reduction <add>, %85, %cst_25 [1] : vector<1x16xf32> to vector<1xf32>
    %87 = vector.shape_cast %86 : vector<1xf32> to vector<1x1xf32>
    %88 = arith.addf %80, %87 : vector<1x1xf32>
    %89 = vector.extract_strided_slice %37 {offsets = [0, 32], sizes = [7, 16], strides = [1, 1]} : vector<20x64xf32> to vector<7x16xf32>
    %cst_26 = arith.constant dense<0xFF800000> : vector<16xf32>
    %90 = vector.multi_reduction <maximumf>, %89, %cst_26 [0] : vector<7x16xf32> to vector<16xf32>
    %91 = vector.shape_cast %90 : vector<16xf32> to vector<1x16xf32>
    %92 = vector.extract_strided_slice %4 {offsets = [0, 32], sizes = [1, 16], strides = [1, 1]} : vector<1x64xf32> to vector<1x16xf32>
    %93 = arith.mulf %91, %92 : vector<1x16xf32>
    %cst_27 = arith.constant dense<0.000000e+00> : vector<1xf32>
    %94 = vector.multi_reduction <add>, %93, %cst_27 [1] : vector<1x16xf32> to vector<1xf32>
    %95 = vector.shape_cast %94 : vector<1xf32> to vector<1x1xf32>
    %96 = arith.addf %88, %95 : vector<1x1xf32>
    %97 = vector.extract_strided_slice %37 {offsets = [0, 48], sizes = [6, 16], strides = [1, 1]} : vector<20x64xf32> to vector<6x16xf32>
    %cst_28 = arith.constant dense<0xFF800000> : vector<16xf32>
    %98 = vector.multi_reduction <maximumf>, %97, %cst_28 [0] : vector<6x16xf32> to vector<16xf32>
    %99 = vector.shape_cast %98 : vector<16xf32> to vector<1x16xf32>
    %100 = vector.extract_strided_slice %4 {offsets = [0, 48], sizes = [1, 16], strides = [1, 1]} : vector<1x64xf32> to vector<1x16xf32>
    %101 = arith.mulf %99, %100 : vector<1x16xf32>
    %cst_29 = arith.constant dense<0.000000e+00> : vector<1xf32>
    %102 = vector.multi_reduction <add>, %101, %cst_29 [1] : vector<1x16xf32> to vector<1xf32>
    %103 = vector.shape_cast %102 : vector<1xf32> to vector<1x1xf32>
    %104 = arith.addf %96, %103 : vector<1x1xf32>
    %105 = arith.addf %71, %104 : vector<1x1xf32>
    %cst_30 = arith.constant 0.000000e+00 : f32
    %106 = vector.broadcast %cst_30 : f32 to vector<1x1xf32>
    %107 = vector.extract_strided_slice %21 {offsets = [8, 0], sizes = [7, 8], strides = [1, 1]} : vector<16x32xf32> to vector<7x8xf32>
    %cst_31 = arith.constant dense<0xFF800000> : vector<8xf32>
    %108 = vector.multi_reduction <maximumf>, %107, %cst_31 [0] : vector<7x8xf32> to vector<8xf32>
    %109 = vector.shape_cast %108 : vector<8xf32> to vector<1x8xf32>
    %110 = vector.extract_strided_slice %2 {offsets = [0, 0], sizes = [1, 8], strides = [1, 1]} : vector<1x32xf32> to vector<1x8xf32>
    %111 = arith.mulf %109, %110 : vector<1x8xf32>
    %cst_32 = arith.constant dense<0.000000e+00> : vector<1xf32>
    %112 = vector.multi_reduction <add>, %111, %cst_32 [1] : vector<1x8xf32> to vector<1xf32>
    %113 = vector.shape_cast %112 : vector<1xf32> to vector<1x1xf32>
    %114 = arith.addf %106, %113 : vector<1x1xf32>
    %115 = vector.extract_strided_slice %21 {offsets = [8, 8], sizes = [6, 8], strides = [1, 1]} : vector<16x32xf32> to vector<6x8xf32>
    %cst_33 = arith.constant dense<0xFF800000> : vector<8xf32>
    %116 = vector.multi_reduction <maximumf>, %115, %cst_33 [0] : vector<6x8xf32> to vector<8xf32>
    %117 = vector.shape_cast %116 : vector<8xf32> to vector<1x8xf32>
    %118 = vector.extract_strided_slice %2 {offsets = [0, 8], sizes = [1, 8], strides = [1, 1]} : vector<1x32xf32> to vector<1x8xf32>
    %119 = arith.mulf %117, %118 : vector<1x8xf32>
    %cst_34 = arith.constant dense<0.000000e+00> : vector<1xf32>
    %120 = vector.multi_reduction <add>, %119, %cst_34 [1] : vector<1x8xf32> to vector<1xf32>
    %121 = vector.shape_cast %120 : vector<1xf32> to vector<1x1xf32>
    %122 = arith.addf %114, %121 : vector<1x1xf32>
    %123 = vector.extract_strided_slice %21 {offsets = [8, 16], sizes = [5, 8], strides = [1, 1]} : vector<16x32xf32> to vector<5x8xf32>
    %cst_35 = arith.constant dense<0xFF800000> : vector<8xf32>
    %124 = vector.multi_reduction <maximumf>, %123, %cst_35 [0] : vector<5x8xf32> to vector<8xf32>
    %125 = vector.shape_cast %124 : vector<8xf32> to vector<1x8xf32>
    %126 = vector.extract_strided_slice %2 {offsets = [0, 16], sizes = [1, 8], strides = [1, 1]} : vector<1x32xf32> to vector<1x8xf32>
    %127 = arith.mulf %125, %126 : vector<1x8xf32>
    %cst_36 = arith.constant dense<0.000000e+00> : vector<1xf32>
    %128 = vector.multi_reduction <add>, %127, %cst_36 [1] : vector<1x8xf32> to vector<1xf32>
    %129 = vector.shape_cast %128 : vector<1xf32> to vector<1x1xf32>
    %130 = arith.addf %122, %129 : vector<1x1xf32>
    %131 = vector.extract_strided_slice %21 {offsets = [8, 24], sizes = [4, 8], strides = [1, 1]} : vector<16x32xf32> to vector<4x8xf32>
    %cst_37 = arith.constant dense<0xFF800000> : vector<8xf32>
    %132 = vector.multi_reduction <maximumf>, %131, %cst_37 [0] : vector<4x8xf32> to vector<8xf32>
    %133 = vector.shape_cast %132 : vector<8xf32> to vector<1x8xf32>
    %134 = vector.extract_strided_slice %2 {offsets = [0, 24], sizes = [1, 8], strides = [1, 1]} : vector<1x32xf32> to vector<1x8xf32>
    %135 = arith.mulf %133, %134 : vector<1x8xf32>
    %cst_38 = arith.constant dense<0.000000e+00> : vector<1xf32>
    %136 = vector.multi_reduction <add>, %135, %cst_38 [1] : vector<1x8xf32> to vector<1xf32>
    %137 = vector.shape_cast %136 : vector<1xf32> to vector<1x1xf32>
    %138 = arith.addf %130, %137 : vector<1x1xf32>
    %139 = arith.addf %5, %138 : vector<1x1xf32>
    %cst_39 = arith.constant 0.000000e+00 : f32
    %140 = vector.broadcast %cst_39 : f32 to vector<1x1xf32>
    %141 = vector.extract_strided_slice %37 {offsets = [10, 0], sizes = [9, 16], strides = [1, 1]} : vector<20x64xf32> to vector<9x16xf32>
    %cst_40 = arith.constant dense<0xFF800000> : vector<16xf32>
    %142 = vector.multi_reduction <maximumf>, %141, %cst_40 [0] : vector<9x16xf32> to vector<16xf32>
    %143 = vector.shape_cast %142 : vector<16xf32> to vector<1x16xf32>
    %144 = vector.extract_strided_slice %4 {offsets = [0, 0], sizes = [1, 16], strides = [1, 1]} : vector<1x64xf32> to vector<1x16xf32>
    %145 = arith.mulf %143, %144 : vector<1x16xf32>
    %cst_41 = arith.constant dense<0.000000e+00> : vector<1xf32>
    %146 = vector.multi_reduction <add>, %145, %cst_41 [1] : vector<1x16xf32> to vector<1xf32>
    %147 = vector.shape_cast %146 : vector<1xf32> to vector<1x1xf32>
    %148 = arith.addf %140, %147 : vector<1x1xf32>
    %149 = vector.extract_strided_slice %37 {offsets = [10, 16], sizes = [8, 16], strides = [1, 1]} : vector<20x64xf32> to vector<8x16xf32>
    %cst_42 = arith.constant dense<0xFF800000> : vector<16xf32>
    %150 = vector.multi_reduction <maximumf>, %149, %cst_42 [0] : vector<8x16xf32> to vector<16xf32>
    %151 = vector.shape_cast %150 : vector<16xf32> to vector<1x16xf32>
    %152 = vector.extract_strided_slice %4 {offsets = [0, 16], sizes = [1, 16], strides = [1, 1]} : vector<1x64xf32> to vector<1x16xf32>
    %153 = arith.mulf %151, %152 : vector<1x16xf32>
    %cst_43 = arith.constant dense<0.000000e+00> : vector<1xf32>
    %154 = vector.multi_reduction <add>, %153, %cst_43 [1] : vector<1x16xf32> to vector<1xf32>
    %155 = vector.shape_cast %154 : vector<1xf32> to vector<1x1xf32>
    %156 = arith.addf %148, %155 : vector<1x1xf32>
    %157 = vector.extract_strided_slice %37 {offsets = [10, 32], sizes = [7, 16], strides = [1, 1]} : vector<20x64xf32> to vector<7x16xf32>
    %cst_44 = arith.constant dense<0xFF800000> : vector<16xf32>
    %158 = vector.multi_reduction <maximumf>, %157, %cst_44 [0] : vector<7x16xf32> to vector<16xf32>
    %159 = vector.shape_cast %158 : vector<16xf32> to vector<1x16xf32>
    %160 = vector.extract_strided_slice %4 {offsets = [0, 32], sizes = [1, 16], strides = [1, 1]} : vector<1x64xf32> to vector<1x16xf32>
    %161 = arith.mulf %159, %160 : vector<1x16xf32>
    %cst_45 = arith.constant dense<0.000000e+00> : vector<1xf32>
    %162 = vector.multi_reduction <add>, %161, %cst_45 [1] : vector<1x16xf32> to vector<1xf32>
    %163 = vector.shape_cast %162 : vector<1xf32> to vector<1x1xf32>
    %164 = arith.addf %156, %163 : vector<1x1xf32>
    %165 = vector.extract_strided_slice %37 {offsets = [10, 48], sizes = [6, 16], strides = [1, 1]} : vector<20x64xf32> to vector<6x16xf32>
    %cst_46 = arith.constant dense<0xFF800000> : vector<16xf32>
    %166 = vector.multi_reduction <maximumf>, %165, %cst_46 [0] : vector<6x16xf32> to vector<16xf32>
    %167 = vector.shape_cast %166 : vector<16xf32> to vector<1x16xf32>
    %168 = vector.extract_strided_slice %4 {offsets = [0, 48], sizes = [1, 16], strides = [1, 1]} : vector<1x64xf32> to vector<1x16xf32>
    %169 = arith.mulf %167, %168 : vector<1x16xf32>
    %cst_47 = arith.constant dense<0.000000e+00> : vector<1xf32>
    %170 = vector.multi_reduction <add>, %169, %cst_47 [1] : vector<1x16xf32> to vector<1xf32>
    %171 = vector.shape_cast %170 : vector<1xf32> to vector<1x1xf32>
    %172 = arith.addf %164, %171 : vector<1x1xf32>
    %173 = arith.addf %139, %172 : vector<1x1xf32>
    %174 = tpu.concatenate %105, %173 in 1 : vector<1x1xf32>, vector<1x1xf32> -> vector<1x2xf32>
    %c0_48 = arith.constant 0 : index
    %c0_49 = arith.constant 0 : index
    %175 = vector.load %arg6[%c0_48, %c0_49] : memref<1x2xf32, #tpu.memory_space<vmem>>, vector<1x2xf32>
    tpu.vector_store %arg6[%c0_48, %c0_49], %174 {strides = array<i32>} : memref<1x2xf32, #tpu.memory_space<vmem>>, vector<1x2xf32>,
    return
  }
  func.func @transform_0(%arg0: i32) -> (i32, i32) {
    %c0_i32 = arith.constant 0 : i32
    %c0_i32_0 = arith.constant 0 : i32
    %c0_i32_1 = arith.constant 0 : i32
    return %c0_i32, %c0_i32_0 : i32, i32
  }
  func.func @transform_1(%arg0: i32) -> (i32, i32) {
    %c0_i32 = arith.constant 0 : i32
    %c0_i32_0 = arith.constant 0 : i32
    %c0_i32_1 = arith.constant 0 : i32
    return %c0_i32, %c0_i32_0 : i32, i32
  }
  func.func @transform_2(%arg0: i32) -> (i32, i32) {
    %c0_i32 = arith.constant 0 : i32
    %c0_i32_0 = arith.constant 0 : i32
    %c0_i32_1 = arith.constant 0 : i32
    return %c0_i32, %c0_i32_0 : i32, i32
  }
  func.func @transform_3(%arg0: i32) -> (i32, i32) {
    %c0_i32 = arith.constant 0 : i32
    %c0_i32_0 = arith.constant 0 : i32
    %c0_i32_1 = arith.constant 0 : i32
    return %c0_i32, %c0_i32_0 : i32, i32
  }
  func.func @transform_4(%arg0: i32) -> (i32, i32) {
    %c0_i32 = arith.constant 0 : i32
    %c0_i32_0 = arith.constant 0 : i32
    %c0_i32_1 = arith.constant 0 : i32
    return %c0_i32, %c0_i32_0 : i32, i32
  }
  func.func @transform_5(%arg0: i32) -> (i32, i32) {
    %c0_i32 = arith.constant 0 : i32
    %c0_i32_0 = arith.constant 0 : i32
    %c0_i32_1 = arith.constant 0 : i32
    return %c0_i32, %c0_i32_0 : i32, i32
  }
}

</mosaic_0001>

<llo_original>
// kernel: dti_forward.1
$region0: #{dti_forward.1}
  #allocation0 [shape = 'u32[]', space=smem, size = 0x4, offset = 0x4, fixed_abs, tag = 'smem constant byte address 0x4 - core index']
  #allocation1 [shape = 'u32[144,128]{1,0:T(1,128)}', space=vmem, size = 0x12000, scoped, tag = 'internal scratch']
  %s0 = inlined_call_operand.vmem [shape: bf16[20,128], index: 0, kind: input, shape index: {}]
  %s1 = inlined_call_operand.vmem [shape: bf16[24,128], index: 1, kind: input, shape index: {}]
  %s2 = inlined_call_operand.vmem [shape: bf16[128,160], index: 2, kind: input, shape index: {}]
  %s3 = inlined_call_operand.vmem [shape: bf16[128,320], index: 3, kind: input, shape index: {}]
  %s4 = inlined_call_operand.vmem [shape: f32[5,128], index: 4, kind: input, shape index: {}]
  %s5 = inlined_call_operand.hbm [shape: f32[1,2], index: 5, kind: output, shape index: {}]
  %s6 = sld [smem:[#allocation0]]
  $region30: #{dti_forward.1} parent=0
    _
  %s8 = ssub.s32 1, %s6
  %s9 = scalar_select 0, %s8, %s6
  $region1: #{dti_forward.1} parent=0
    #allocation2 [shape = 'u8[512]{0}', space=vmem, size = 0x400, scoped, tag = 'output window, operand 0, single buffered']
    #allocation3 [shape = 's32[1]{0}', space=sflag, size = 0x4, scoped, tag = 'scoped memory for dti_forward.1']
    %10 = vsyncpa [#allocation3], 0
    // Predicated region
    $region2: #{dti_forward.1} parent=1 // pred_check
      _
    $region3: #{dti_forward.1} parent=1 // pred_check_branch
      %12 = sbr.rel (0) target = $region5
    $region4: #{dti_forward.1} parent=1 // pred_region
      _
    $region5: #{dti_forward.1} parent=1 // pred_fallthru
      _
    // Predicated region
    $region6: #{dti_forward.1} parent=1 // pred_check
      _
    $region7: #{dti_forward.1} parent=1 // pred_check_branch
      %14 = sbr.rel (0) target = $region9
    $region8: #{dti_forward.1} parent=1 // pred_region
      _
    $region9: #{dti_forward.1} parent=1 // pred_fallthru
      _
    // Predicated region
    $region10: #{dti_forward.1} parent=1 // pred_check
      _
    $region11: #{dti_forward.1} parent=1 // pred_check_branch
      %16 = sbr.rel (0) target = $region13
    $region12: #{dti_forward.1} parent=1 // pred_region
      _
    $region13: #{dti_forward.1} parent=1 // pred_fallthru
      _
    // Predicated region
    $region14: #{dti_forward.1} parent=1 // pred_check
      _
    $region15: #{dti_forward.1} parent=1 // pred_check_branch
      %18 = sbr.rel (0) target = $region17
    $region16: #{dti_forward.1} parent=1 // pred_region
      _
    $region17: #{dti_forward.1} parent=1 // pred_fallthru
      _
    // Predicated region
    $region18: #{dti_forward.1} parent=1 // pred_check
      _
    $region19: #{dti_forward.1} parent=1 // pred_check_branch
      %20 = sbr.rel (0) target = $region21
    $region20: #{dti_forward.1} parent=1 // pred_region
      _
    $region21: #{dti_forward.1} parent=1 // pred_fallthru
      _
    %v22 = vld [vmem:[%s4] sm:$0x1f]
    %v23 = vld [vmem:[%s0] sm:$0xf]
    %v24 = vld [vmem:[%s0 + $0x4] sm:$0xf]
    %v25 = vld [vmem:[%s0 + $0x8] sm:$0x3]
    %v26 = vld [vmem:[%s2] sm:$0xff]
    %v27 = vld [vmem:[%s2 + $0x8] sm:$0xff]
    %v28 = vld [vmem:[%s2 + $0x10] sm:$0xff]
    %v29 = vld [vmem:[%s2 + $0x18] sm:$0xff]
    %v30 = vld [vmem:[%s2 + $0x20] sm:$0xff]
    %v31 = vld [vmem:[%s2 + $0x28] sm:$0xff]
    %v32 = vld [vmem:[%s2 + $0x30] sm:$0xff]
    %v33 = vld [vmem:[%s2 + $0x38] sm:$0xff]
    %v34 = vld [vmem:[%s2 + $0x40] sm:$0xff]
    %v35 = vld [vmem:[%s2 + $0x48] sm:$0xff]
    %v36 = vld [vmem:[%s2 + $0x50] sm:$0xff]
    %v37 = vld [vmem:[%s2 + $0x58] sm:$0xff]
    %v38 = vld [vmem:[%s2 + $0x60] sm:$0xff]
    %v39 = vld [vmem:[%s2 + $0x68] sm:$0xff]
    %v40 = vld [vmem:[%s2 + $0x70] sm:$0xff]
    %v41 = vld [vmem:[%s2 + $0x78] sm:$0xff]
    %v45 = vunpack.c.l.b16 %v23
    %v46 = vunpack.c.l.b16 %v24
    %v47 = vunpack.c.l.b16 %v25
    %v48 = vpack.c.b16 %v46, %v45
    %v49 = vpack.c.b16 %v47, %v47
    %v68 = vunpack.c.l.b16 %v26
    %v69 = vunpack.c.h.b16 %v26
    %v70 = vunpack.c.l.b16 %v27
    %v71 = vunpack.c.h.b16 %v27
    %v72 = vunpack.c.l.b16 %v28
    %v73 = vunpack.c.h.b16 %v28
    %v74 = vunpack.c.l.b16 %v29
    %v75 = vunpack.c.h.b16 %v29
    %v76 = vunpack.c.l.b16 %v30
    %v77 = vunpack.c.h.b16 %v30
    %v78 = vunpack.c.l.b16 %v31
    %v79 = vunpack.c.h.b16 %v31
    %v80 = vunpack.c.l.b16 %v32
    %v81 = vunpack.c.h.b16 %v32
    %v82 = vunpack.c.l.b16 %v33
    %v83 = vunpack.c.h.b16 %v33
    %v84 = vunpack.c.l.b16 %v34
    %v85 = vunpack.c.h.b16 %v34
    %v86 = vunpack.c.l.b16 %v35
    %v87 = vunpack.c.h.b16 %v35
    %v88 = vunpack.c.l.b16 %v36
    %v89 = vunpack.c.h.b16 %v36
    %v90 = vunpack.c.l.b16 %v37
    %v91 = vunpack.c.h.b16 %v37
    %v92 = vunpack.c.l.b16 %v38
    %v93 = vunpack.c.h.b16 %v38
    %v94 = vunpack.c.l.b16 %v39
    %v95 = vunpack.c.h.b16 %v39
    %v96 = vunpack.c.l.b16 %v40
    %v97 = vunpack.c.h.b16 %v40
    %v98 = vunpack.c.l.b16 %v41
    %v99 = vunpack.c.h.b16 %v41
    %v100 = vpack.c.b16 %v70, %v68
    %v101 = vpack.c.b16 %v71, %v69
    %v102 = vpack.c.b16 %v74, %v72
    %v103 = vpack.c.b16 %v75, %v73
    %v104 = vpack.c.b16 %v78, %v76
    %v105 = vpack.c.b16 %v79, %v77
    %v106 = vpack.c.b16 %v82, %v80
    %v107 = vpack.c.b16 %v83, %v81
    %v108 = vpack.c.b16 %v86, %v84
    %v109 = vpack.c.b16 %v87, %v85
    %v110 = vpack.c.b16 %v90, %v88
    %v111 = vpack.c.b16 %v91, %v89
    %v112 = vpack.c.b16 %v94, %v92
    %v113 = vpack.c.b16 %v95, %v93
    %v114 = vpack.c.b16 %v98, %v96
    %v115 = vpack.c.b16 %v99, %v97
    %132 = vmatprep.subr.bf16.mxu0 %v115
    %133 = vmatpush1.bf16.msra.mxu0 %v114
    %134 = vmatprep.subr.bf16.mxu0 %v113
    %135 = vmatpush1.bf16.msra.mxu0 %v112
    %136 = vmatprep.subr.bf16.mxu0 %v111
    %137 = vmatpush1.bf16.msra.mxu0 %v110
    %138 = vmatprep.subr.bf16.mxu0 %v109
    %139 = vmatpush1.bf16.msra.mxu0 %v108
    %140 = vmatprep.subr.bf16.mxu0 %v107
    %141 = vmatpush1.bf16.msra.mxu0 %v106
    %142 = vmatprep.subr.bf16.mxu0 %v105
    %143 = vmatpush1.bf16.msra.mxu0 %v104
    %144 = vmatprep.subr.bf16.mxu0 %v103
    %145 = vmatpush1.bf16.msra.mxu0 %v102
    %146 = vmatprep.subr.bf16.mxu0 %v101
    %147 = vmatpush1.bf16.msra.mxu0 %v100
    %148 = vmatprep.subr.bf16.mxu0 0
    %149 = vmatpush2.bf16.msra.mxu0 0
    %150 = vmatprep.subr.bf16.mxu0 0
    %151 = vmatpush2.bf16.msra.mxu0 0
    %152 = vmatprep.subr.bf16.mxu0 0
    %153 = vmatpush2.bf16.msra.mxu0 0
    %154 = vmatprep.subr.bf16.mxu0 0
    %155 = vmatpush2.bf16.msra.mxu0 0
    %156 = vmatprep.subr.bf16.mxu0 0
    %157 = vmatpush2.bf16.msra.mxu0 0
    %158 = vmatprep.subr.bf16.mxu0 0
    %159 = vmatpush2.bf16.msra.mxu0 0
    %160 = vmatprep.subr.bf16.mxu0 0
    %161 = vmatpush2.bf16.msra.mxu0 0
    %162 = vmatprep.subr.bf16.mxu0 0
    %163 = vmatpush2.bf16.msra.mxu0 0
    %164 = vmatprep.mubr.bf16.mxu0 0
    %165 = vmatmul.mubr.bf16.gmra.mxu0 %v48
    %v166 = vpop.f32.mrf.mxu0
    %v167 = vadd.f32 0.0, %v166
    %v168 = vpop.f32.mrf.mxu0
    %v169 = vadd.f32 0.0, %v168
    %v170 = vpop.f32.mrf.mxu0
    %v171 = vadd.f32 0.0, %v170
    %v172 = vpop.f32.mrf.mxu0
    %v173 = vadd.f32 0.0, %v172
    %174 = vmatprep.mubr.bf16.mxu0 0
    %175 = vmatmul.mubr.bf16.gmra.mxu0 %v49
    %v176 = vpop.f32.mrf.mxu0
    %v177 = vadd.f32 0.0, %v176
    %v178 = vpop.f32.mrf.mxu0
    %v179 = vadd.f32 0.0, %v178
    %v180 = vpop.f32.mrf.mxu0
    %v181 = vpop.f32.mrf.mxu0
    %182 = vdwg.mxu0
    %vm186 = vcmask 1046528
    %v187 = vrot.slane %v167, 1
    %v188 = vrot.slane %v171, 1
    %v189 = vsel %vm186, %v187, %v188
    %v190 = vrot.slane %v177, 1
    %v191 = vsel %vm186, %v188, %v190
    %192 = vrot.lane.b32.xlu0 %v189, 96
    %v193 = vpop.permute.xlu0 %192
    %194 = vrot.lane.b32.xlu0 %v191, 96
    %v195 = vpop.permute.xlu0 %194
    %v198 = vadd.f32 %v167, %v193
    %v199 = vadd.f32 %v171, %v195
    %vm200 = vcmask 1045504
    %v201 = vrot.slane %v167, 2
    %v202 = vrot.slane %v171, 2
    %v203 = vsel %vm200, %v201, %v202
    %v204 = vrot.slane %v177, 2
    %v205 = vsel %vm200, %v202, %v204
    %206 = vrot.lane.b32.xlu0 %v203, 64
    %v207 = vpop.permute.xlu0 %206
    %208 = vrot.lane.b32.xlu0 %v205, 64
    %v209 = vpop.permute.xlu0 %208
    %v212 = vadd.f32 %v198, %v207
    %v213 = vadd.f32 %v199, %v209
    %vm214 = vcmask 1044480
    %v215 = vrot.slane %v167, 3
    %v216 = vrot.slane %v171, 3
    %v217 = vsel %vm214, %v215, %v216
    %v218 = vrot.slane %v177, 3
    %v219 = vsel %vm214, %v216, %v218
    %220 = vrot.lane.b32.xlu0 %v217, 32
    %v221 = vpop.permute.xlu0 %220
    %222 = vrot.lane.b32.xlu0 %v219, 32
    %v223 = vpop.permute.xlu0 %222
    %v226 = vadd.f32 %v212, %v221
    %v227 = vadd.f32 %v213, %v223
    %vm231 = vcmask 1043456
    %v232 = vrot.slane %v169, 4
    %v233 = vrot.slane %v173, 4
    %v234 = vsel %vm231, %v232, %v233
    %v235 = vrot.slane %v179, 4
    %v236 = vsel %vm231, %v233, %v235
    %v239 = vadd.f32 %v226, %v234
    %v240 = vadd.f32 %v227, %v236
    %v241 = vlaneseq
    %v242 = vshrl.u32 %v241, 7
    %v243 = vsub.s32 0, %v242
    %v244 = vrot.slane %v22, %v243
    %v245 = vadd.f32 %v239, %v244
    %v246 = vadd.f32 %v240, %v244
    %v247 = vmax.f32 %v245, 0.0
    %v248 = vmax.f32 %v246, 0.0
    %v249 = vld [vmem:[%s1] sm:$0xf]
    %v250 = vld [vmem:[%s1 + $0x4] sm:$0xf]
    %v251 = vld [vmem:[%s1 + $0x8] sm:$0xf]
    %v252 = vld [vmem:[%s3] sm:$0xff]
    %v253 = vld [vmem:[%s3 + $0x8] sm:$0xf]
    %v254 = vld [vmem:[%s3 + $0xc] sm:$0xff]
    %v255 = vld [vmem:[%s3 + $0x14] sm:$0xf]
    %v256 = vld [vmem:[%s3 + $0x18] sm:$0xff]
    %v257 = vld [vmem:[%s3 + $0x20] sm:$0xf]
    %v258 = vld [vmem:[%s3 + $0x24] sm:$0xff]
    %v259 = vld [vmem:[%s3 + $0x2c] sm:$0xf]
    %v260 = vld [vmem:[%s3 + $0x30] sm:$0xff]
    %v261 = vld [vmem:[%s3 + $0x38] sm:$0xf]
    %v262 = vld [vmem:[%s3 + $0x3c] sm:$0xff]
    %v263 = vld [vmem:[%s3 + $0x44] sm:$0xf]
    %v264 = vld [vmem:[%s3 + $0x48] sm:$0xff]
    %v265 = vld [vmem:[%s3 + $0x50] sm:$0xf]
    %v266 = vld [vmem:[%s3 + $0x54] sm:$0xff]
    %v267 = vld [vmem:[%s3 + $0x5c] sm:$0xf]
    %v268 = vld [vmem:[%s3 + $0x60] sm:$0xff]
    %v269 = vld [vmem:[%s3 + $0x68] sm:$0xf]
    %v270 = vld [vmem:[%s3 + $0x6c] sm:$0xff]
    %v271 = vld [vmem:[%s3 + $0x74] sm:$0xf]
    %v272 = vld [vmem:[%s3 + $0x78] sm:$0xff]
    %v273 = vld [vmem:[%s3 + $0x80] sm:$0xf]
    %v274 = vld [vmem:[%s3 + $0x84] sm:$0xff]
    %v275 = vld [vmem:[%s3 + $0x8c] sm:$0xf]
    %v276 = vld [vmem:[%s3 + $0x90] sm:$0xff]
    %v277 = vld [vmem:[%s3 + $0x98] sm:$0xf]
    %v278 = vld [vmem:[%s3 + $0x9c] sm:$0xff]
    %v279 = vld [vmem:[%s3 + $0xa4] sm:$0xf]
    %v280 = vld [vmem:[%s3 + $0xa8] sm:$0xff]
    %v281 = vld [vmem:[%s3 + $0xb0] sm:$0xf]
    %v282 = vld [vmem:[%s3 + $0xb4] sm:$0xff]
    %v283 = vld [vmem:[%s3 + $0xbc] sm:$0xf]
    %v287 = vunpack.c.l.b16 %v249
    %v288 = vunpack.c.l.b16 %v250
    %v289 = vunpack.c.l.b16 %v251
    %v290 = vpack.c.b16 %v288, %v287
    %v291 = vpack.c.b16 %v289, %v289
    %v326 = vunpack.c.l.b16 %v252
    %v327 = vunpack.c.h.b16 %v252
    %v328 = vunpack.c.l.b16 %v253
    %v329 = vunpack.c.l.b16 %v254
    %v330 = vunpack.c.h.b16 %v254
    %v331 = vunpack.c.l.b16 %v255
    %v332 = vunpack.c.l.b16 %v256
    %v333 = vunpack.c.h.b16 %v256
    %v334 = vunpack.c.l.b16 %v257
    %v335 = vunpack.c.l.b16 %v258
    %v336 = vunpack.c.h.b16 %v258
    %v337 = vunpack.c.l.b16 %v259
    %v338 = vunpack.c.l.b16 %v260
    %v339 = vunpack.c.h.b16 %v260
    %v340 = vunpack.c.l.b16 %v261
    %v341 = vunpack.c.l.b16 %v262
    %v342 = vunpack.c.h.b16 %v262
    %v343 = vunpack.c.l.b16 %v263
    %v344 = vunpack.c.l.b16 %v264
    %v345 = vunpack.c.h.b16 %v264
    %v346 = vunpack.c.l.b16 %v265
    %v347 = vunpack.c.l.b16 %v266
    %v348 = vunpack.c.h.b16 %v266
    %v349 = vunpack.c.l.b16 %v267
    %v350 = vunpack.c.l.b16 %v268
    %v351 = vunpack.c.h.b16 %v268
    %v352 = vunpack.c.l.b16 %v269
    %v353 = vunpack.c.l.b16 %v270
    %v354 = vunpack.c.h.b16 %v270
    %v355 = vunpack.c.l.b16 %v271
    %v356 = vunpack.c.l.b16 %v272
    %v357 = vunpack.c.h.b16 %v272
    %v358 = vunpack.c.l.b16 %v273
    %v359 = vunpack.c.l.b16 %v274
    %v360 = vunpack.c.h.b16 %v274
    %v361 = vunpack.c.l.b16 %v275
    %v362 = vunpack.c.l.b16 %v276
    %v363 = vunpack.c.h.b16 %v276
    %v364 = vunpack.c.l.b16 %v277
    %v365 = vunpack.c.l.b16 %v278
    %v366 = vunpack.c.h.b16 %v278
    %v367 = vunpack.c.l.b16 %v279
    %v368 = vunpack.c.l.b16 %v280
    %v369 = vunpack.c.h.b16 %v280
    %v370 = vunpack.c.l.b16 %v281
    %v371 = vunpack.c.l.b16 %v282
    %v372 = vunpack.c.h.b16 %v282
    %v373 = vunpack.c.l.b16 %v283
    %v374 = vpack.c.b16 %v329, %v326
    %v375 = vpack.c.b16 %v330, %v327
    %v376 = vpack.c.b16 %v331, %v328
    %v377 = vpack.c.b16 %v335, %v332
    %v378 = vpack.c.b16 %v336, %v333
    %v379 = vpack.c.b16 %v337, %v334
    %v380 = vpack.c.b16 %v341, %v338
    %v381 = vpack.c.b16 %v342, %v339
    %v382 = vpack.c.b16 %v343, %v340
    %v383 = vpack.c.b16 %v347, %v344
    %v384 = vpack.c.b16 %v348, %v345
    %v385 = vpack.c.b16 %v349, %v346
    %v386 = vpack.c.b16 %v353, %v350
    %v387 = vpack.c.b16 %v354, %v351
    %v388 = vpack.c.b16 %v355, %v352
    %v389 = vpack.c.b16 %v359, %v356
    %v390 = vpack.c.b16 %v360, %v357
    %v391 = vpack.c.b16 %v361, %v358
    %v392 = vpack.c.b16 %v365, %v362
    %v393 = vpack.c.b16 %v366, %v363
    %v394 = vpack.c.b16 %v367, %v364
    %v395 = vpack.c.b16 %v371, %v368
    %v396 = vpack.c.b16 %v372, %v369
    %v397 = vpack.c.b16 %v373, %v370
    %422 = vmatprep.subr.bf16.mxu0 %v396
    %423 = vmatpush1.bf16.msra.mxu0 %v395
    %424 = vmatprep.subr.bf16.mxu0 %v393
    %425 = vmatpush1.bf16.msra.mxu0 %v392
    %426 = vmatprep.subr.bf16.mxu0 %v390
    %427 = vmatpush1.bf16.msra.mxu0 %v389
    %428 = vmatprep.subr.bf16.mxu0 %v387
    %429 = vmatpush1.bf16.msra.mxu0 %v386
    %430 = vmatprep.subr.bf16.mxu0 %v384
    %431 = vmatpush1.bf16.msra.mxu0 %v383
    %432 = vmatprep.subr.bf16.mxu0 %v381
    %433 = vmatpush1.bf16.msra.mxu0 %v380
    %434 = vmatprep.subr.bf16.mxu0 %v378
    %435 = vmatpush1.bf16.msra.mxu0 %v377
    %436 = vmatprep.subr.bf16.mxu0 %v375
    %437 = vmatpush1.bf16.msra.mxu0 %v374
    %438 = vmatprep.subr.bf16.mxu0 0
    %439 = vmatpush2.bf16.msra.mxu0 0
    %440 = vmatprep.subr.bf16.mxu0 0
    %441 = vmatpush2.bf16.msra.mxu0 0
    %442 = vmatprep.subr.bf16.mxu0 0
    %443 = vmatpush2.bf16.msra.mxu0 0
    %444 = vmatprep.subr.bf16.mxu0 0
    %445 = vmatpush2.bf16.msra.mxu0 0
    %446 = vmatprep.subr.bf16.mxu0 0
    %447 = vmatpush2.bf16.msra.mxu0 0
    %448 = vmatprep.subr.bf16.mxu0 0
    %449 = vmatpush2.bf16.msra.mxu0 0
    %450 = vmatprep.subr.bf16.mxu0 0
    %451 = vmatpush2.bf16.msra.mxu0 0
    %452 = vmatprep.subr.bf16.mxu0 0
    %453 = vmatpush2.bf16.msra.mxu0 0
    %454 = vmatprep.mubr.bf16.mxu0 0
    %455 = vmatmul.mubr.bf16.gmra.mxu0 %v290
    %v456 = vpop.f32.mrf.mxu0
    %v457 = vadd.f32 0.0, %v456
    %v458 = vpop.f32.mrf.mxu0
    %v459 = vadd.f32 0.0, %v458
    %v460 = vpop.f32.mrf.mxu0
    %v461 = vadd.f32 0.0, %v460
    %v462 = vpop.f32.mrf.mxu0
    %v463 = vadd.f32 0.0, %v462
    %464 = vmatprep.mubr.bf16.mxu0 0
    %465 = vmatmul.mubr.bf16.gmra.mxu0 %v291
    %v466 = vpop.f32.mrf.mxu0
    %v467 = vadd.f32 0.0, %v466
    %v468 = vpop.f32.mrf.mxu0
    %v469 = vadd.f32 0.0, %v468
    %v470 = vpop.f32.mrf.mxu0
    %v471 = vpop.f32.mrf.mxu0
    %472 = vdwg.mxu0
    %473 = vmatprep.subr.bf16.mxu0 0
    %474 = vmatpush1.bf16.msra.mxu0 %v397
    %475 = vmatprep.subr.bf16.mxu0 0
    %476 = vmatpush1.bf16.msra.mxu0 %v394
    %477 = vmatprep.subr.bf16.mxu0 0
    %478 = vmatpush1.bf16.msra.mxu0 %v391
    %479 = vmatprep.subr.bf16.mxu0 0
    %480 = vmatpush1.bf16.msra.mxu0 %v388
    %481 = vmatprep.subr.bf16.mxu0 0
    %482 = vmatpush1.bf16.msra.mxu0 %v385
    %483 = vmatprep.subr.bf16.mxu0 0
    %484 = vmatpush1.bf16.msra.mxu0 %v382
    %485 = vmatprep.subr.bf16.mxu0 0
    %486 = vmatpush1.bf16.msra.mxu0 %v379
    %487 = vmatprep.subr.bf16.mxu0 0
    %488 = vmatpush1.bf16.msra.mxu0 %v376
    %489 = vmatprep.subr.bf16.mxu0 0
    %490 = vmatpush2.bf16.msra.mxu0 0
    %491 = vmatprep.subr.bf16.mxu0 0
    %492 = vmatpush2.bf16.msra.mxu0 0
    %493 = vmatprep.subr.bf16.mxu0 0
    %494 = vmatpush2.bf16.msra.mxu0 0
    %495 = vmatprep.subr.bf16.mxu0 0
    %496 = vmatpush2.bf16.msra.mxu0 0
    %497 = vmatprep.subr.bf16.mxu0 0
    %498 = vmatpush2.bf16.msra.mxu0 0
    %499 = vmatprep.subr.bf16.mxu0 0
    %500 = vmatpush2.bf16.msra.mxu0 0
    %501 = vmatprep.subr.bf16.mxu0 0
    %502 = vmatpush2.bf16.msra.mxu0 0
    %503 = vmatprep.subr.bf16.mxu0 0
    %504 = vmatpush2.bf16.msra.mxu0 0
    %505 = vmatprep.mubr.bf16.mxu0 0
    %506 = vmatmul.mubr.bf16.gmra.mxu0 %v290
    %v507 = vpop.f32.mrf.mxu0
    %v508 = vadd.f32 0.0, %v507
    %v509 = vpop.f32.mrf.mxu0
    %v510 = vpop.f32.mrf.mxu0
    %v511 = vadd.f32 0.0, %v510
    %v512 = vpop.f32.mrf.mxu0
    %513 = vmatprep.mubr.bf16.mxu0 0
    %514 = vmatmul.mubr.bf16.gmra.mxu0 %v291
    %v515 = vpop.f32.mrf.mxu0
    %v516 = vadd.f32 0.0, %v515
    %v517 = vpop.f32.mrf.mxu0
    %v518 = vpop.f32.mrf.mxu0
    %v519 = vpop.f32.mrf.mxu0
    %520 = vdwg.mxu0
    %v524 = vrot.slane %v457, 1
    %v525 = vrot.slane %v461, 1
    %v526 = vsel %vm186, %v524, %v525
    %v527 = vrot.slane %v467, 1
    %v528 = vsel %vm186, %v525, %v527
    %529 = vrot.lane.b32.xlu0 %v526, 64
    %v530 = vpop.permute.xlu0 %529
    %531 = vrot.lane.b32.xlu0 %v528, 64
    %v532 = vpop.permute.xlu0 %531
    %533 = vrot.lane.b32.xlu0 %v527, 64
    %v534 = vpop.permute.xlu0 %533
    %v538 = vadd.f32 %v457, %v530
    %v539 = vadd.f32 %v461, %v532
    %v540 = vadd.f32 %v467, %v534
    %v544 = vrot.slane %v459, 2
    %v545 = vrot.slane %v463, 2
    %v546 = vsel %vm200, %v544, %v545
    %v547 = vrot.slane %v469, 2
    %v548 = vsel %vm200, %v545, %v547
    %v552 = vadd.f32 %v538, %v546
    %v553 = vadd.f32 %v539, %v548
    %v554 = vadd.f32 %v540, %v547
    %v555 = vrot.slane %v459, 3
    %v556 = vrot.slane %v463, 3
    %v557 = vsel %vm214, %v555, %v556
    %v558 = vrot.slane %v469, 3
    %v559 = vsel %vm214, %v556, %v558
    %560 = vrot.lane.b32.xlu0 %v557, 64
    %v561 = vpop.permute.xlu0 %560
    %562 = vrot.lane.b32.xlu0 %v559, 64
    %v563 = vpop.permute.xlu0 %562
    %564 = vrot.lane.b32.xlu0 %v558, 64
    %v565 = vpop.permute.xlu0 %564
    %v569 = vadd.f32 %v552, %v561
    %v570 = vadd.f32 %v553, %v563
    %v571 = vadd.f32 %v554, %v565
    %v575 = vrot.slane %v508, 4
    %v576 = vrot.slane %v511, 4
    %v577 = vsel %vm231, %v575, %v576
    %v578 = vrot.slane %v516, 4
    %v579 = vsel %vm231, %v576, %v578
    %v583 = vadd.f32 %v569, %v577
    %v584 = vadd.f32 %v570, %v579
    %v585 = vadd.f32 %v571, %v578
    %v586 = vlaneseq
    %v587 = vshrl.u32 %v586, 7
    %v588 = vsub.s32 2, %v587
    %v589 = vrot.slane %v22, %v588
    %v590 = vadd.f32 %v583, %v589
    %v591 = vadd.f32 %v584, %v589
    %v592 = vadd.f32 %v585, %v589
    %v593 = vmax.f32 %v590, 0.0
    %v594 = vmax.f32 %v591, 0.0
    %v595 = vmax.f32 %v592, 0.0
    %vm596 = vcmask 63488
    %v597 = vsel %vm596, %v247, -inf
    %v598 = vrot.slane %v597, 4
    %v599 = vmax.f32 %v597, %v598
    %v600 = vrot.slane %v599, 2
    %v601 = vmax.f32 %v599, %v600
    %v602 = vrot.slane %v601, 1
    %v603 = vmax.f32 %v601, %v602
    %v604 = vmul.f32 %v603, %v22
    %vm605 = vcmask 58369
    %v606 = vsel %vm605, %v604, 0.0
    %607 = vadd.xlane.f32.xlu0 %v606
    %v608 = vpop.xlane.xlu0 %607
    %v609 = vadd.f32 %v608, 0.0
    %vm610 = vcmask 128064
    %v611 = vsel %vm610, %v247, -inf
    %v612 = vrot.slane %v611, 4
    %v613 = vmax.f32 %v611, %v612
    %v614 = vrot.slane %v613, 2
    %v615 = vmax.f32 %v613, %v614
    %v616 = vrot.slane %v615, 1
    %v617 = vmax.f32 %v615, %v616
    %v618 = vmul.f32 %v617, %v22
    %620 = vrot.lane.b32.xlu0 %v618, 120
    %v621 = vpop.permute.xlu0 %620
    %v623 = vsel %vm605, %v621, 0.0
    %624 = vadd.xlane.f32.xlu0 %v623
    %v625 = vpop.xlane.xlu0 %624
    %v626 = vadd.f32 %v609, %v625
    %vm627 = vcmask 192640
    %v628 = vsel %vm627, %v247, -inf
    %v629 = vrot.slane %v628, 4
    %v630 = vmax.f32 %v628, %v629
    %v631 = vrot.slane %v630, 2
    %v632 = vmax.f32 %v630, %v631
    %v633 = vrot.slane %v632, 1
    %v634 = vmax.f32 %v632, %v633
    %v635 = vmul.f32 %v634, %v22
    %637 = vrot.lane.b32.xlu0 %v635, 112
    %v638 = vpop.permute.xlu0 %637
    %v640 = vsel %vm605, %v638, 0.0
    %641 = vadd.xlane.f32.xlu0 %v640
    %v642 = vpop.xlane.xlu0 %641
    %v643 = vadd.f32 %v626, %v642
    %vm644 = vcmask 257216
    %v645 = vsel %vm644, %v247, -inf
    %v646 = vrot.slane %v645, 4
    %v647 = vmax.f32 %v645, %v646
    %v648 = vrot.slane %v647, 2
    %v649 = vmax.f32 %v647, %v648
    %v650 = vrot.slane %v649, 1
    %v651 = vmax.f32 %v649, %v650
    %v652 = vmul.f32 %v651, %v22
    %654 = vrot.lane.b32.xlu0 %v652, 104
    %v655 = vpop.permute.xlu0 %654
    %v657 = vsel %vm605, %v655, 0.0
    %658 = vadd.xlane.f32.xlu0 %v657
    %v659 = vpop.xlane.xlu0 %658
    %v660 = vadd.f32 %v643, %v659
    %v662 = vrot.slane %v660, 5
    %v664 = vadd.f32 %v22, %v662
    %vm665 = vcmask 130048
    %v666 = vsel %vm665, %v593, -inf
    %vm667 = vcmask 122880
    %v668 = vsel %vm667, %v594, -inf
    %v669 = vmax.f32 %v666, %v668
    %v670 = vrot.slane %v669, 4
    %v671 = vmax.f32 %v669, %v670
    %v672 = vrot.slane %v671, 2
    %v673 = vmax.f32 %v671, %v672
    %v674 = vrot.slane %v673, 1
    %v675 = vmax.f32 %v673, %v674
    %v676 = vmul.f32 %v675, %v22
    %vm677 = vcmask 125955
    %v678 = vsel %vm677, %v676, 0.0
    %679 = vadd.xlane.f32.xlu0 %v678
    %v680 = vpop.xlane.xlu0 %679
    %v681 = vadd.f32 %v680, 0.0
    %vm682 = vcmask 261248
    %v683 = vsel %vm682, %v593, -inf
    %v684 = vrot.slane %v683, 4
    %v685 = vmax.f32 %v683, %v684
    %v686 = vrot.slane %v685, 2
    %v687 = vmax.f32 %v685, %v686
    %v688 = vrot.slane %v687, 1
    %v689 = vmax.f32 %v687, %v688
    %v690 = vmul.f32 %v689, %v22
    %692 = vrot.lane.b32.xlu0 %v690, 112
    %v693 = vpop.permute.xlu0 %692
    %v695 = vsel %vm677, %v693, 0.0
    %696 = vadd.xlane.f32.xlu0 %v695
    %v697 = vpop.xlane.xlu0 %696
    %v698 = vadd.f32 %v681, %v697
    %vm699 = vcmask 391424
    %v700 = vsel %vm699, %v593, -inf
    %v701 = vrot.slane %v700, 4
    %v702 = vmax.f32 %v700, %v701
    %v703 = vrot.slane %v702, 2
    %v704 = vmax.f32 %v702, %v703
    %v705 = vrot.slane %v704, 1
    %v706 = vmax.f32 %v704, %v705
    %v707 = vmul.f32 %v706, %v22
    %709 = vrot.lane.b32.xlu0 %v707, 96
    %v710 = vpop.permute.xlu0 %709
    %v712 = vsel %vm677, %v710, 0.0
    %713 = vadd.xlane.f32.xlu0 %v712
    %v714 = vpop.xlane.xlu0 %713
    %v715 = vadd.f32 %v698, %v714
    %vm716 = vcmask 521600
    %v717 = vsel %vm716, %v593, -inf
    %v718 = vrot.slane %v717, 4
    %v719 = vmax.f32 %v717, %v718
    %v720 = vrot.slane %v719, 2
    %v721 = vmax.f32 %v719, %v720
    %v722 = vrot.slane %v721, 1
    %v723 = vmax.f32 %v721, %v722
    %v724 = vmul.f32 %v723, %v22
    %726 = vrot.lane.b32.xlu0 %v724, 80
    %v727 = vpop.permute.xlu0 %726
    %v729 = vsel %vm677, %v727, 0.0
    %730 = vadd.xlane.f32.xlu0 %v729
    %v731 = vpop.xlane.xlu0 %730
    %v732 = vadd.f32 %v715, %v731
    %v734 = vrot.slane %v732, 7
    %v736 = vadd.f32 %v664, %v734
    %v737 = vsel %vm596, %v248, -inf
    %v738 = vrot.slane %v737, 4
    %v739 = vmax.f32 %v737, %v738
    %v740 = vrot.slane %v739, 2
    %v741 = vmax.f32 %v739, %v740
    %v742 = vrot.slane %v741, 1
    %v743 = vmax.f32 %v741, %v742
    %v744 = vmul.f32 %v743, %v22
    %v745 = vsel %vm605, %v744, 0.0
    %746 = vadd.xlane.f32.xlu0 %v745
    %v747 = vpop.xlane.xlu0 %746
    %v748 = vadd.f32 %v747, 0.0
    %v749 = vsel %vm610, %v248, -inf
    %v750 = vrot.slane %v749, 4
    %v751 = vmax.f32 %v749, %v750
    %v752 = vrot.slane %v751, 2
    %v753 = vmax.f32 %v751, %v752
    %v754 = vrot.slane %v753, 1
    %v755 = vmax.f32 %v753, %v754
    %v756 = vmul.f32 %v755, %v22
    %758 = vrot.lane.b32.xlu0 %v756, 120
    %v759 = vpop.permute.xlu0 %758
    %v761 = vsel %vm605, %v759, 0.0
    %762 = vadd.xlane.f32.xlu0 %v761
    %v763 = vpop.xlane.xlu0 %762
    %v764 = vadd.f32 %v748, %v763
    %v765 = vsel %vm627, %v248, -inf
    %v766 = vrot.slane %v765, 4
    %v767 = vmax.f32 %v765, %v766
    %v768 = vrot.slane %v767, 2
    %v769 = vmax.f32 %v767, %v768
    %v770 = vrot.slane %v769, 1
    %v771 = vmax.f32 %v769, %v770
    %v772 = vmul.f32 %v771, %v22
    %774 = vrot.lane.b32.xlu0 %v772, 112
    %v775 = vpop.permute.xlu0 %774
    %v777 = vsel %vm605, %v775, 0.0
    %778 = vadd.xlane.f32.xlu0 %v777
    %v779 = vpop.xlane.xlu0 %778
    %v780 = vadd.f32 %v764, %v779
    %v781 = vsel %vm644, %v248, -inf
    %v782 = vrot.slane %v781, 4
    %v783 = vmax.f32 %v781, %v782
    %v784 = vrot.slane %v783, 2
    %v785 = vmax.f32 %v783, %v784
    %v786 = vrot.slane %v785, 1
    %v787 = vmax.f32 %v785, %v786
    %v788 = vmul.f32 %v787, %v22
    %790 = vrot.lane.b32.xlu0 %v788, 104
    %v791 = vpop.permute.xlu0 %790
    %v793 = vsel %vm605, %v791, 0.0
    %794 = vadd.xlane.f32.xlu0 %v793
    %v795 = vpop.xlane.xlu0 %794
    %v796 = vadd.f32 %v780, %v795
    %v798 = vrot.slane %v796, 5
    %v800 = vadd.f32 %v22, %v798
    %vm801 = vcmask 130050
    %v802 = vsel %vm801, %v594, -inf
    %vm803 = vcmask 124928
    %v804 = vsel %vm803, %v595, -inf
    %v805 = vmax.f32 %v802, %v804
    %v806 = vrot.slane %v805, 4
    %v807 = vmax.f32 %v805, %v806
    %v808 = vrot.slane %v807, 2
    %v809 = vmax.f32 %v807, %v808
    %v810 = vrot.slane %v809, 1
    %v811 = vmax.f32 %v809, %v810
    %v812 = vmul.f32 %v811, %v22
    %v813 = vsel %vm677, %v812, 0.0
    %814 = vadd.xlane.f32.xlu0 %v813
    %v815 = vpop.xlane.xlu0 %814
    %v816 = vadd.f32 %v815, 0.0
    %vm817 = vcmask 261250
    %v818 = vsel %vm817, %v594, -inf
    %vm819 = vcmask 255104
    %v820 = vsel %vm819, %v595, -inf
    %v821 = vmax.f32 %v818, %v820
    %v822 = vrot.slane %v821, 4
    %v823 = vmax.f32 %v821, %v822
    %v824 = vrot.slane %v823, 2
    %v825 = vmax.f32 %v823, %v824
    %v826 = vrot.slane %v825, 1
    %v827 = vmax.f32 %v825, %v826
    %v828 = vmul.f32 %v827, %v22
    %830 = vrot.lane.b32.xlu0 %v828, 112
    %v831 = vpop.permute.xlu0 %830
    %v833 = vsel %vm677, %v831, 0.0
    %834 = vadd.xlane.f32.xlu0 %v833
    %v835 = vpop.xlane.xlu0 %834
    %v836 = vadd.f32 %v816, %v835
    %vm837 = vcmask 392450
    %v838 = vsel %vm837, %v594, -inf
    %vm839 = vcmask 385280
    %v840 = vsel %vm839, %v595, -inf
    %v841 = vmax.f32 %v838, %v840
    %v842 = vrot.slane %v841, 4
    %v843 = vmax.f32 %v841, %v842
    %v844 = vrot.slane %v843, 2
    %v845 = vmax.f32 %v843, %v844
    %v846 = vrot.slane %v845, 1
    %v847 = vmax.f32 %v845, %v846
    %v848 = vmul.f32 %v847, %v22
    %850 = vrot.lane.b32.xlu0 %v848, 96
    %v851 = vpop.permute.xlu0 %850
    %v853 = vsel %vm677, %v851, 0.0
    %854 = vadd.xlane.f32.xlu0 %v853
    %v855 = vpop.xlane.xlu0 %854
    %v856 = vadd.f32 %v836, %v855
    %vm857 = vcmask 523650
    %v858 = vsel %vm857, %v594, -inf
    %v859 = vrot.slane %v858, 4
    %v860 = vmax.f32 %v858, %v859
    %v861 = vrot.slane %v860, 2
    %v862 = vmax.f32 %v860, %v861
    %v863 = vrot.slane %v862, 1
    %v864 = vmax.f32 %v862, %v863
    %v865 = vmul.f32 %v864, %v22
    %867 = vrot.lane.b32.xlu0 %v865, 80
    %v868 = vpop.permute.xlu0 %867
    %v870 = vsel %vm677, %v868, 0.0
    %871 = vadd.xlane.f32.xlu0 %v870
    %v872 = vpop.xlane.xlu0 %871
    %v873 = vadd.f32 %v856, %v872
    %v875 = vrot.slane %v873, 7
    %v877 = vadd.f32 %v800, %v875
    %879 = vrot.lane.b32.xlu0 %v877, 1
    %v880 = vpop.permute.xlu0 %879
    %vm882 = vcmask 7168
    %v883 = vsel %vm882, %v736, %v880
    %vm884 = vcmask 12292
    %885 = vst.msk [vmem:[#allocation2 - $0x4] sm:$0x10] %vm884, %v883
    // Predicated region
    $region22: #{dti_forward.1} parent=1 // pred_check
      _
    $region23: #{dti_forward.1} parent=1 // pred_check_branch
      %887 = sbr.rel (0) target = $region25
    $region24: #{dti_forward.1} parent=1 // pred_region
      %s889 = ssub.s32 16, 16
      %890 = vsyncadd [#allocation3], %s889
      %s892 = sshll.u32 [#allocation2], 4
      %s893 = int_to_ptr.vmem [resolvable:$true] %s892
      %895 = dma.vmem_to_hbm [thread:$0]  %s893, 16, %s5, [#allocation3]
    $region25: #{dti_forward.1} parent=1 // pred_fallthru
      _
    // Predicated region
    $region26: #{dti_forward.1} parent=1 // pred_check
      _
    $region27: #{dti_forward.1} parent=1 // pred_check_branch
      %897 = sbr.rel (0) target = $region29
    $region28: #{dti_forward.1} parent=1 // pred_region
      %898 = dma.done [#allocation3], 16
    $region29: #{dti_forward.1} parent=1 // pred_fallthru
      _
    %899 = vsyncpa [#allocation3], 1

</llo_original>
